<compile_context>
chip_gen: v6e
topology: v6e:2x2x1
jax: 0.10.0
libtpu: 0.0.40
codegen_flags: <defaults>
</compile_context>

<pallas_src>
import functools
import math

import jax
import jax.numpy as jnp
from jax import lax
from jax.experimental import pallas as pl
from jax.experimental.pallas import tpu as pltpu  # noqa: F401  (not needed at toy sizes)


# ----------------------------- in-kernel helpers ------------------------------


def _layernorm(x, gamma, beta, eps):
    # Matches the PyTorch module: unbiased std (ddof=1) and division by (std + eps).
    d = x.shape[-1]
    mean = jnp.mean(x, axis=-1, keepdims=True)
    xc = x - mean
    var = jnp.sum(xc * xc, axis=-1, keepdims=True) * (1.0 / (d - 1))
    return gamma * xc / (jnp.sqrt(var) + eps) + beta


def _gelu(x):
    c = math.sqrt(2.0 / math.pi)
    return 0.5 * x * (1.0 + jnp.tanh(c * (x + 0.044715 * x * x * x)))


# ------------------------------- Pallas kernels --------------------------------


def _embedding_kernel(ids_ref, tok_ref, pe_ref, out_ref, *, batch, seq):
    # ids_ref: (B*S, 1) int32   flattened token ids
    # tok_ref: (V, D)   f32     token table (toy V -> VMEM resident; for real BERT
    #                           vocab keep it in HBM and DMA-gather rows instead)
    # pe_ref : (S, D)   f32     sinusoidal positional rows for this sequence length
    # out_ref: (B*S, D) f32     lane-dense output slab
    n, d = out_ref.shape
    v = tok_ref.shape[0]
    ids = ids_ref[...]                                                     # (N, 1)
    onehot = (ids == lax.broadcasted_iota(jnp.int32, (n, v), 1)).astype(jnp.float32)
    tok = jnp.dot(onehot, tok_ref[...], preferred_element_type=jnp.float32)  # MXU gather
    out3 = tok.reshape(batch, seq, d) + pe_ref[...][None, :, :]
    out_ref[...] = out3.reshape(n, d)
    # TODO(synk): training-mode dropout (p=0.1) would use pltpu.prng_seed /
    # pltpu.stateful_bernoulli; inference dropout is identity, so omitted.


def _transformer_block_kernel(
        x_ref, ids_ref,
        ln1_g_ref, ln1_b_ref,
        wq_ref, bq_ref, wk_ref, bk_ref, wv_ref, bv_ref, wo_ref, bo_ref,
        ln2_g_ref, ln2_b_ref,
        w1_ref, b1_ref, w2_ref, b2_ref,
        out_ref, *, batch, seq, heads, eps):
    n, d = out_ref.shape
    dk = d // heads
    inv_sqrt_dk = 1.0 / math.sqrt(dk)

    x = x_ref[...]                                   # (N, D) = (B*S, D)
    valid = ids_ref[...] > 0                         # (B, S) key-padding mask, built in-kernel

    # ---- sublayer 1: x + MultiHeadedAttention(LayerNorm(x), mask) ----
    h = _layernorm(x, ln1_g_ref[...], ln1_b_ref[...], eps)
    q = jnp.dot(h, wq_ref[...], preferred_element_type=jnp.float32) + bq_ref[...]
    k = jnp.dot(h, wk_ref[...], preferred_element_type=jnp.float32) + bk_ref[...]
    v = jnp.dot(h, wv_ref[...], preferred_element_type=jnp.float32) + bv_ref[...]
    q3 = q.reshape(batch, seq, d)
    k3 = k.reshape(batch, seq, d)
    v3 = v.reshape(batch, seq, d)
    wo = wo_ref[...]

    ctx_proj = jnp.zeros((n, d), jnp.float32)
    for hd in range(heads):                          # static unroll (heads is small)
        lo = hd * dk
        qh = q3[:, :, lo:lo + dk]                    # (B, S, dk) static lane slice
        kh = k3[:, :, lo:lo + dk]
        vh = v3[:, :, lo:lo + dk]
        scores = jnp.einsum('bqd,bkd->bqk', qh, kh,
                            preferred_element_type=jnp.float32) * inv_sqrt_dk
        scores = jnp.where(valid[:, None, :], scores, jnp.float32(-1e9))
        m = jnp.max(scores, axis=-1, keepdims=True)
        e = jnp.exp(scores - m)
        p = e / jnp.sum(e, axis=-1, keepdims=True)
        ctx = jnp.einsum('bqk,bkd->bqd', p, vh,
                         preferred_element_type=jnp.float32)      # (B, S, dk)
        # Fold this head back through its row-slice of the output projection
        # (avoids any lane-axis concat of per-head context).
        ctx_proj = ctx_proj + jnp.dot(ctx.reshape(n, dk), wo[lo:lo + dk, :],
                                      preferred_element_type=jnp.float32)
    x = x + ctx_proj + bo_ref[...]

    # ---- sublayer 2: x + PositionwiseFeedForward(LayerNorm(x)) ----
    h2 = _layernorm(x, ln2_g_ref[...], ln2_b_ref[...], eps)
    f = jnp.dot(h2, w1_ref[...], preferred_element_type=jnp.float32) + b1_ref[...]
    f = _gelu(f)
    f = jnp.dot(f, w2_ref[...], preferred_element_type=jnp.float32) + b2_ref[...]
    out_ref[...] = x + f
    # Dropouts (attention probs, FFN, sublayer, block output) are identity in eval.


# --------------------------------- wrappers ------------------------------------


def transformer_encoder(sequence, params, *, heads):
    """sequence (B,S) int -> (B,S,D) f32, matching TransformerEncoder.forward (eval mode)."""
    B, S = sequence.shape
    D = params['tok_table'].shape[1]
    N = B * S
    ids = sequence.astype(jnp.int32)

    # Embedding: one kernel call, flattened lane-dense output.
    x = pl.pallas_call(
        functools.partial(_embedding_kernel, batch=B, seq=S),
        out_shape=jax.ShapeDtypeStruct((N, D), jnp.float32),
    )(ids.reshape(N, 1), params['tok_table'], params['pe'][:S])

    # One fused Pallas kernel per transformer block (same compiled callable reused).
    block_fn = pl.pallas_call(
        functools.partial(_transformer_block_kernel,
                          batch=B, seq=S, heads=heads, eps=1e-6),
        out_shape=jax.ShapeDtypeStruct((N, D), jnp.float32),
    )
    for layer in params['layers']:
        x = block_fn(x, ids,
                     layer['ln1_g'], layer['ln1_b'],
                     layer['wq'], layer['bq'], layer['wk'], layer['bk'],
                     layer['wv'], layer['bv'], layer['wo'], layer['bo'],
                     layer['ln2_g'], layer['ln2_b'],
                     layer['w1'], layer['b1'], layer['w2'], layer['b2'])
    return x.reshape(B, S, D)


# -------------------------- parameter construction -----------------------------


def make_positional_table(d_model, max_len=256):
    position = jnp.arange(0, max_len, dtype=jnp.float32)[:, None]
    div_term = jnp.exp(jnp.arange(0, d_model, 2, dtype=jnp.float32)
                       * -(math.log(10000.0) / d_model))
    pe = jnp.zeros((max_len, d_model), dtype=jnp.float32)
    pe = pe.at[:, 0::2].set(jnp.sin(position * div_term))
    pe = pe.at[:, 1::2].set(jnp.cos(position * div_term))
    return pe


def make_params(key, vocab, hidden, n_layers, max_len=256):
    ff = 4 * hidden
    keys = jax.random.split(key, 1 + n_layers)
    tok = jax.random.normal(keys[0], (vocab, hidden), jnp.float32)
    tok = tok.at[0].set(0.0)                                  # padding_idx=0 row
    params = {'tok_table': tok,
              'pe': make_positional_table(hidden, max_len),
              'layers': []}

    def lin(k, fan_in, fan_out):
        kw, kb = jax.random.split(k)
        lim = 1.0 / math.sqrt(fan_in)
        w = jax.random.uniform(kw, (fan_in, fan_out), jnp.float32, -lim, lim)
        b = jax.random.uniform(kb, (1, fan_out), jnp.float32, -lim, lim)
        return w, b

    for li in range(n_layers):
        lk = jax.random.split(keys[1 + li], 6)
        wq, bq = lin(lk[0], hidden, hidden)
        wk, bk = lin(lk[1], hidden, hidden)
        wv, bv = lin(lk[2], hidden, hidden)
        wo, bo = lin(lk[3], hidden, hidden)
        w1, b1 = lin(lk[4], hidden, ff)
        w2, b2 = lin(lk[5], ff, hidden)
        params['layers'].append(dict(
            ln1_g=jnp.ones((1, hidden), jnp.float32),
            ln1_b=jnp.zeros((1, hidden), jnp.float32),
            wq=wq, bq=bq, wk=wk, bk=bk, wv=wv, bv=bv, wo=wo, bo=bo,
            ln2_g=jnp.ones((1, hidden), jnp.float32),
            ln2_b=jnp.zeros((1, hidden), jnp.float32),
            w1=w1, b1=b1, w2=w2, b2=b2))
    return params


# ---------------------------- pure-JAX reference --------------------------------


def reference_forward(sequence, params, *, heads, eps=1e-6):
    P = lax.Precision.HIGHEST
    B, S = sequence.shape
    D = params['tok_table'].shape[1]
    dk = D // heads
    x = params['tok_table'][sequence] + params['pe'][:S][None, :, :]
    valid = sequence > 0

    def layernorm(y, g, b):
        mean = y.mean(-1, keepdims=True)
        std = jnp.std(y, axis=-1, keepdims=True, ddof=1)
        return g * (y - mean) / (std + eps) + b

    def gelu(y):
        return 0.5 * y * (1.0 + jnp.tanh(math.sqrt(2.0 / math.pi)
                                         * (y + 0.044715 * y ** 3)))

    for layer in params['layers']:
        h = layernorm(x, layer['ln1_g'][0], layer['ln1_b'][0])
        q = jnp.einsum('bsd,de->bse', h, layer['wq'], precision=P) + layer['bq'][0]
        k = jnp.einsum('bsd,de->bse', h, layer['wk'], precision=P) + layer['bk'][0]
        v = jnp.einsum('bsd,de->bse', h, layer['wv'], precision=P) + layer['bv'][0]
        qh = q.reshape(B, S, heads, dk).transpose(0, 2, 1, 3)
        kh = k.reshape(B, S, heads, dk).transpose(0, 2, 1, 3)
        vh = v.reshape(B, S, heads, dk).transpose(0, 2, 1, 3)
        scores = jnp.einsum('bhqd,bhkd->bhqk', qh, kh, precision=P) / math.sqrt(dk)
        scores = jnp.where(valid[:, None, None, :], scores, -1e9)
        p = jax.nn.softmax(scores, axis=-1)
        ctx = jnp.einsum('bhqk,bhkd->bhqd', p, vh, precision=P)
        ctx = ctx.transpose(0, 2, 1, 3).reshape(B, S, D)
        x = x + jnp.einsum('bsd,de->bse', ctx, layer['wo'], precision=P) + layer['bo'][0]
        h2 = layernorm(x, layer['ln2_g'][0], layer['ln2_b'][0])
        f = jnp.einsum('bsd,df->bsf', h2, layer['w1'], precision=P) + layer['b1'][0]
        f = gelu(f)
        f = jnp.einsum('bsf,fd->bsd', f, layer['w2'], precision=P) + layer['b2'][0]
        x = x + f
    return x


# ------------------------------------ main ---------------------------------------


if __name__ == "__main__":
    VOCAB = 32
    HIDDEN = 128      # hidden / d_model (keeps the lane axis fully dense)
    HEADS = 4         # d_k = 32
    LAYERS = 2
    BATCH = 2
    SEQ = 8
    MAX_LEN = 256

    key = jax.random.PRNGKey(0)
    k_par, k_ids = jax.random.split(key)
    params = make_params(k_par, VOCAB, HIDDEN, LAYERS, MAX_LEN)
    sequence = jax.random.randint(k_ids, (BATCH, SEQ), 0, VOCAB, dtype=jnp.int32)
    sequence = sequence.at[0, -1].set(0)      # guarantee a padding token -> mask path exercised

    out = transformer_encoder(sequence, params, heads=HEADS)
    out = jax.block_until_ready(out)

    ref = reference_forward(sequence, params, heads=HEADS)
    assert out.shape == (BATCH, SEQ, HIDDEN)
    assert jnp.allclose(out, ref, atol=3e-2, rtol=3e-2), "mismatch vs reference"

    print("KERNEL_OK")
</pallas_src>

<mosaic_0001>
module attributes {stable_mosaic.version = 11 : i64} {
  func.func @_embedding_kernel(%arg0: memref<16x1xi32, #tpu.memory_space<vmem>>, %arg1: memref<32x128xf32, #tpu.memory_space<vmem>>, %arg2: memref<8x128xf32, #tpu.memory_space<vmem>>, %arg3: memref<16x128xf32, #tpu.memory_space<vmem>>) attributes {dimension_semantics = [], scalar_prefetch = 0 : i64, scratch_operands = 0 : i64, tpu.core_type = #tpu.core_type<tc>} {
    %c0 = arith.constant 0 : index
    %c0_0 = arith.constant 0 : index
    %0 = vector.load %arg0[%c0, %c0_0] : memref<16x1xi32, #tpu.memory_space<vmem>>, vector<16x1xi32>
    %1 = tpu.iota {dimensions = array<i32: 1>} : vector<16x32xi32>
    %2 = vector.broadcast %0 : vector<16x1xi32> to vector<16x32xi32>
    %3 = arith.cmpi eq, %2, %1 : vector<16x32xi32>
    %4 = arith.extui %3 : vector<16x32xi1> to vector<16x32xi32>
    %5 = arith.sitofp %4 : vector<16x32xi32> to vector<16x32xf32>
    %c0_1 = arith.constant 0 : index
    %c0_2 = arith.constant 0 : index
    %6 = vector.load %arg1[%c0_1, %c0_2] : memref<32x128xf32, #tpu.memory_space<vmem>>, vector<32x128xf32>
    %cst = arith.constant dense<0.000000e+00> : vector<16x128xf32>
    %7 = tpu.matmul %5, %6, %cst {dimension_numbers = #tpu.dot_dimension_numbers<[1], [0], [0], [1], [0, 0, 1, 1], [], []>} : vector<16x32xf32>, vector<32x128xf32>, vector<16x128xf32> -> vector<16x128xf32>
    %8 = vector.shape_cast %7 : vector<16x128xf32> to vector<2x8x128xf32>
    %c0_3 = arith.constant 0 : index
    %c0_4 = arith.constant 0 : index
    %9 = vector.load %arg2[%c0_3, %c0_4] : memref<8x128xf32, #tpu.memory_space<vmem>>, vector<8x128xf32>
    %10 = vector.shape_cast %9 : vector<8x128xf32> to vector<1x8x128xf32>
    %11 = vector.broadcast %10 : vector<1x8x128xf32> to vector<2x8x128xf32>
    %12 = arith.addf %8, %11 : vector<2x8x128xf32>
    %13 = vector.shape_cast %12 : vector<2x8x128xf32> to vector<16x128xf32>
    %c0_5 = arith.constant 0 : index
    %c0_6 = arith.constant 0 : index
    %14 = vector.load %arg3[%c0_5, %c0_6] : memref<16x128xf32, #tpu.memory_space<vmem>>, vector<16x128xf32>
    tpu.vector_store %arg3[%c0_5, %c0_6], %13 {strides = array<i32>} : memref<16x128xf32, #tpu.memory_space<vmem>>, vector<16x128xf32>,
    return
  }
}

</mosaic_0001>

<llo_original>
// kernel: tpu_custom_call.1
$region0: #{tpu_custom_call.1}
  #allocation0 [shape = 'u32[]', space=smem, size = 0x4, offset = 0x4, fixed_abs, tag = 'smem constant byte address 0x4 - core index']
  #allocation1 [shape = 'u32[144,128]{1,0:T(1,128)}', space=vmem, size = 0x12000, scoped, tag = 'internal scratch']
  %s0 = inlined_call_operand.vmem [shape: s32[16,1], index: 0, kind: input, shape index: {}]
  %s1 = inlined_call_operand.hbm [shape: f32[32,128], index: 1, kind: input, shape index: {}]
  %s2 = inlined_call_operand.vmem [shape: f32[8,128], index: 2, kind: input, shape index: {}]
  %s3 = inlined_call_operand.hbm [shape: f32[16,128], index: 3, kind: output, shape index: {}]
  %s4 = sld [smem:[#allocation0]]
  $region26: #{tpu_custom_call.1} parent=0
    _
  %s6 = ssub.s32 1, %s4
  %s7 = scalar_select 0, %s6, %s4
  $region1: #{tpu_custom_call.1} parent=0
    #allocation2 [shape = 'u8[16384]{0}', space=vmem, size = 0x4000, scoped, tag = 'input window, operand 1, single buffered']
    #allocation3 [shape = 's32[1]{0}', space=sflag, size = 0x4, scoped, tag = 'scoped memory for tpu_custom_call.1']
    #allocation4 [shape = 's32[1]{0}', space=sflag, size = 0x4, scoped, tag = 'scoped memory for tpu_custom_call.1']
    #allocation5 [shape = 'u8[8192]{0}', space=vmem, size = 0x2000, scoped, tag = 'output window, operand 0, single buffered']
    %8 = vsyncpa [#allocation3], 0
    %9 = vsyncpa [#allocation4], 0
    // Predicated region
    $region2: #{tpu_custom_call.1} parent=1 // pred_check
      _
    $region3: #{tpu_custom_call.1} parent=1 // pred_check_branch
      %11 = sbr.rel (0) target = $region5
    $region4: #{tpu_custom_call.1} parent=1 // pred_region
      _
    $region5: #{tpu_custom_call.1} parent=1 // pred_fallthru
      _
    // Predicated region
    $region6: #{tpu_custom_call.1} parent=1 // pred_check
      _
    $region7: #{tpu_custom_call.1} parent=1 // pred_check_branch
      %13 = sbr.rel (0) target = $region9
    $region8: #{tpu_custom_call.1} parent=1 // pred_region
      %s15 = ssub.s32 512, 512
      %16 = vsyncadd [#allocation3], %s15
      %s17 = sshll.u32 [#allocation2], 4
      %s18 = int_to_ptr.vmem [resolvable:$true] %s17
      %23 = dma.hbm_to_vmem [thread:$0]  %s1, 512, %s18, [#allocation3], 128, 128, 8
    $region9: #{tpu_custom_call.1} parent=1 // pred_fallthru
      _
    // Predicated region
    $region10: #{tpu_custom_call.1} parent=1 // pred_check
      _
    $region11: #{tpu_custom_call.1} parent=1 // pred_check_branch
      %25 = sbr.rel (0) target = $region13
    $region12: #{tpu_custom_call.1} parent=1 // pred_region
      _
    $region13: #{tpu_custom_call.1} parent=1 // pred_fallthru
      _
    // Predicated region
    $region14: #{tpu_custom_call.1} parent=1 // pred_check
      _
    $region15: #{tpu_custom_call.1} parent=1 // pred_check_branch
      %27 = sbr.rel (0) target = $region17
    $region16: #{tpu_custom_call.1} parent=1 // pred_region
      %28 = dma.done [#allocation3], 512
    $region17: #{tpu_custom_call.1} parent=1 // pred_fallthru
      _
    %v29 = vld [vmem:[%s0] sm:$0xff]
    %v30 = vld [vmem:[%s0 + $0x8] sm:$0xff]
    %v31 = vlaneseq
    %v32 = vand.u32 %v31, 127
    %33 = vset.pattern.permute.xlu0 0
    %34 = vperm.xlu0 %33, %v29
    %v35 = vpop.permute.xlu0 %34
    %36 = vset.pattern.permute.xlu0 0
    %37 = vperm.xlu0 %36, %v30
    %v38 = vpop.permute.xlu0 %37
    %vm39 = vcmp.eq.s32.totalorder %v35, %v32
    %vm40 = vcmp.eq.s32.totalorder %v38, %v32
    %v41 = vsel %vm39, 1, 0
    %v42 = vsel %vm40, 1, 0
    %v43 = vcvt.s32.f32 %v41
    %v44 = vcvt.s32.f32 %v42
    %v45 = vld [vmem:[#allocation2] sm:$0xff]
    %v46 = vld [vmem:[#allocation2 + $0x8] sm:$0xff]
    %v47 = vld [vmem:[#allocation2 + $0x10] sm:$0xff]
    %v48 = vld [vmem:[#allocation2 + $0x18] sm:$0xff]
    %vm49 = vcmask 261120
    %v51 = vsel %vm49, %v43, 0
    %v54 = vsel %vm49, %v44, 0
    %56 = vmatprep.subr.mxu0 0.0
    %57 = vmatpush1.msra.mxu0 0.0
    %58 = vmatprep.subr.mxu0 0.0
    %59 = vmatpush1.msra.mxu0 0.0
    %60 = vmatprep.subr.mxu0 0.0
    %61 = vmatpush1.msra.mxu0 0.0
    %62 = vmatprep.subr.mxu0 0.0
    %63 = vmatpush1.msra.mxu0 0.0
    %64 = vmatprep.subr.mxu0 0.0
    %65 = vmatpush1.msra.mxu0 0.0
    %66 = vmatprep.subr.mxu0 0.0
    %67 = vmatpush1.msra.mxu0 0.0
    %68 = vmatprep.subr.mxu0 0.0
    %69 = vmatpush1.msra.mxu0 0.0
    %70 = vmatprep.subr.mxu0 0.0
    %71 = vmatpush1.msra.mxu0 0.0
    %72 = vmatprep.subr.mxu0 0.0
    %73 = vmatpush1.msra.mxu0 0.0
    %74 = vmatprep.subr.mxu0 0.0
    %75 = vmatpush1.msra.mxu0 0.0
    %76 = vmatprep.subr.mxu0 0.0
    %77 = vmatpush1.msra.mxu0 0.0
    %78 = vmatprep.subr.mxu0 0.0
    %79 = vmatpush1.msra.mxu0 0.0
    %80 = vmatprep.subr.mxu0 0.0
    %81 = vmatpush1.msra.mxu0 %v48
    %82 = vmatprep.subr.mxu0 0.0
    %83 = vmatpush1.msra.mxu0 %v47
    %84 = vmatprep.subr.mxu0 0.0
    %85 = vmatpush1.msra.mxu0 %v46
    %86 = vmatprep.subr.mxu0 0.0
    %87 = vmatpush1.msra.mxu0 %v45
    %88 = vmatprep.subr.mxu0 0.0
    %89 = vmatpush2.msra.mxu0 0.0
    %90 = vmatprep.subr.mxu0 0.0
    %91 = vmatpush2.msra.mxu0 0.0
    %92 = vmatprep.subr.mxu0 0.0
    %93 = vmatpush2.msra.mxu0 0.0
    %94 = vmatprep.subr.mxu0 0.0
    %95 = vmatpush2.msra.mxu0 0.0
    %96 = vmatprep.subr.mxu0 0.0
    %97 = vmatpush2.msra.mxu0 0.0
    %98 = vmatprep.subr.mxu0 0.0
    %99 = vmatpush2.msra.mxu0 0.0
    %100 = vmatprep.subr.mxu0 0.0
    %101 = vmatpush2.msra.mxu0 0.0
    %102 = vmatprep.subr.mxu0 0.0
    %103 = vmatpush2.msra.mxu0 0.0
    %104 = vmatprep.subr.mxu0 0.0
    %105 = vmatpush2.msra.mxu0 0.0
    %106 = vmatprep.subr.mxu0 0.0
    %107 = vmatpush2.msra.mxu0 0.0
    %108 = vmatprep.subr.mxu0 0.0
    %109 = vmatpush2.msra.mxu0 0.0
    %110 = vmatprep.subr.mxu0 0.0
    %111 = vmatpush2.msra.mxu0 0.0
    %112 = vmatprep.subr.mxu0 0.0
    %113 = vmatpush2.msra.mxu0 0.0
    %114 = vmatprep.subr.mxu0 0.0
    %115 = vmatpush2.msra.mxu0 0.0
    %116 = vmatprep.subr.mxu0 0.0
    %117 = vmatpush2.msra.mxu0 0.0
    %118 = vmatprep.subr.mxu0 0.0
    %119 = vmatpush2.msra.mxu0 0.0
    %120 = vmatprep.mubr.f32.mxu0 0.0
    %121 = vmatmul.mubr.f32.gmra.mxu0 %v51
    %v122 = vpop.f32.mrf.mxu0
    %v123 = vadd.f32 0.0, %v122
    %v124 = vpop.f32.mrf.mxu0
    %125 = vmatprep.mubr.f32.mxu0 0.0
    %126 = vmatmul.mubr.f32.gmra.mxu0 %v54
    %v127 = vpop.f32.mrf.mxu0
    %v128 = vadd.f32 0.0, %v127
    %v129 = vpop.f32.mrf.mxu0
    %130 = vdwg.mxu0
    %v131 = vld [vmem:[%s2] sm:$0xff]
    %v132 = vadd.f32 %v123, %v131
    %v133 = vadd.f32 %v128, %v131
    %134 = vst [vmem:[#allocation5] sm:$0xff] %v132
    %135 = vst [vmem:[#allocation5 + $0x8] sm:$0xff] %v133
    // Predicated region
    $region18: #{tpu_custom_call.1} parent=1 // pred_check
      _
    $region19: #{tpu_custom_call.1} parent=1 // pred_check_branch
      %137 = sbr.rel (0) target = $region21
    $region20: #{tpu_custom_call.1} parent=1 // pred_region
      %s139 = ssub.s32 256, 256
      %140 = vsyncadd [#allocation4], %s139
      %s141 = sshll.u32 [#allocation5], 4
      %s142 = int_to_ptr.vmem [resolvable:$true] %s141
      %147 = dma.vmem_to_hbm [thread:$0]  %s142, 256, %s3, [#allocation4], 128, 128, 8
    $region21: #{tpu_custom_call.1} parent=1 // pred_fallthru
      _
    // Predicated region
    $region22: #{tpu_custom_call.1} parent=1 // pred_check
      _
    $region23: #{tpu_custom_call.1} parent=1 // pred_check_branch
      %149 = sbr.rel (0) target = $region25
    $region24: #{tpu_custom_call.1} parent=1 // pred_region
      %150 = dma.done [#allocation4], 256
    $region25: #{tpu_custom_call.1} parent=1 // pred_fallthru
      _
    %151 = vsyncpa [#allocation3], 1
    %152 = vsyncpa [#allocation4], 1

</llo_original>
